<compile_context>
chip_gen: v7x
topology: tpu7x:2x2x1
jax: 0.10.0
libtpu: 0.0.40
codegen_flags: <defaults>
</compile_context>

<pallas_src>
import jax
import jax.numpy as jnp
from jax.experimental import pallas as pl
from jax.experimental.pallas import tpu as pltpu


def _pick_tile(length, target, multiple):
    """Largest tile <= target that divides `length` and is a multiple of `multiple`.

    Falls back to the full length (no tiling along that axis) when no such
    divisor exists, which is always a legal block shape.
    """
    if length <= target:
        return length
    best = None
    t = multiple
    while t <= target:
        if length % t == 0:
            best = t
        t += multiple
    return best if best is not None else length


def _make_attention_kernel(multi_k):
    """Build the kernel, statically specialized on whether there is >1 k tile."""

    def kernel(x_ref, y_ref, bias_ref, wq_ref, wk_ref, wv_ref, wo_ref,
               o_ref, out_sc, *flash_sc):
        h = pl.program_id(2)
        nh = pl.num_programs(2)

        if multi_k:
            q_sc, m_sc, l_sc, acc_sc = flash_sc
            ki = pl.program_id(3)
            nk = pl.num_programs(3)

            # Fresh output accumulator for each (batch, q-tile) slab.
            @pl.when((h == 0) & (ki == 0))
            def _():
                out_sc[...] = jnp.zeros_like(out_sc)

            # New head: project this q tile onto head h (1/sqrt(d) already
            # folded into Wq) and reset the online-softmax state.
            @pl.when(ki == 0)
            def _():
                q_sc[...] = jnp.dot(x_ref[0], wq_ref[0],
                                    preferred_element_type=jnp.float32
                                    ).astype(q_sc.dtype)
                m_sc[...] = jnp.full_like(m_sc, -jnp.inf)
                l_sc[...] = jnp.zeros_like(l_sc)
                acc_sc[...] = jnp.zeros_like(acc_sc)

            # K / V projections for this head & k tile (bf16 MXU, f32 accum).
            y = y_ref[0]                                             # (tk, H)
            k16 = jnp.dot(y, wk_ref[0],
                          preferred_element_type=jnp.float32).astype(jnp.bfloat16)
            v16 = jnp.dot(y, wv_ref[0],
                          preferred_element_type=jnp.float32).astype(jnp.bfloat16)

            # Scaled dot-product logits + bias (bias broadcasts over heads).
            logits = jnp.einsum('qd,kd->qk', q_sc[...], k16,
                                preferred_element_type=jnp.float32)
            logits = logits + bias_ref[0, 0]                        # (tq, tk)

            # Online softmax update (all f32).
            m_prev = m_sc[...]
            m_new = jnp.maximum(m_prev, jnp.max(logits, axis=-1, keepdims=True))
            alpha = jnp.exp(m_prev - m_new)
            p = jnp.exp(logits - m_new)
            l_sc[...] = alpha * l_sc[...] + jnp.sum(p, axis=-1, keepdims=True)
            acc_sc[...] = alpha * acc_sc[...] + jnp.dot(
                p.astype(jnp.bfloat16), v16, preferred_element_type=jnp.float32)
            m_sc[...] = m_new

            # End of the k loop for this head: normalize (deferred, after the
            # PV matmul) and fold combine_heads into the output projection:
            #   out += head_out_h @ WoT[h*d:(h+1)*d, :]
            # TODO(synk): attention dropout with p > 0 in train mode not
            #             implemented (attention_dropout = 0.0 -> identity).
            @pl.when(ki == nk - 1)
            def _():
                inv_l = pl.reciprocal(l_sc[...], approx=True)
                ctx = (acc_sc[...] * inv_l).astype(jnp.bfloat16)    # (tq, d)
                out_sc[...] += jnp.dot(ctx, wo_ref[0],
                                       preferred_element_type=jnp.float32)

            # Last head & last k tile: emit the output tile.
            @pl.when((h == nh - 1) & (ki == nk - 1))
            def _():
                o_ref[0] = out_sc[...].astype(o_ref.dtype)

        else:
            # Single k tile: one-shot softmax, no online-softmax state at all.
            @pl.when(h == 0)
            def _():
                out_sc[...] = jnp.zeros_like(out_sc)

            q16 = jnp.dot(x_ref[0], wq_ref[0],
                          preferred_element_type=jnp.float32).astype(jnp.bfloat16)
            y = y_ref[0]
            k16 = jnp.dot(y, wk_ref[0],
                          preferred_element_type=jnp.float32).astype(jnp.bfloat16)
            v16 = jnp.dot(y, wv_ref[0],
                          preferred_element_type=jnp.float32).astype(jnp.bfloat16)

            logits = jnp.einsum('qd,kd->qk', q16, k16,
                                preferred_element_type=jnp.float32)
            logits = logits + bias_ref[0, 0]

            m = jnp.max(logits, axis=-1, keepdims=True)
            p = jnp.exp(logits - m)
            l = jnp.sum(p, axis=-1, keepdims=True)
            ctx = jnp.dot(p.astype(jnp.bfloat16), v16,
                          preferred_element_type=jnp.float32)
            ctx = (ctx * pl.reciprocal(l, approx=True)).astype(jnp.bfloat16)
            # TODO(synk): attention dropout with p > 0 in train mode not
            #             implemented (attention_dropout = 0.0 -> identity).
            out_sc[...] += jnp.dot(ctx, wo_ref[0],
                                   preferred_element_type=jnp.float32)

            @pl.when(h == nh - 1)
            def _():
                o_ref[0] = out_sc[...].astype(o_ref.dtype)

    return kernel


def attention_pallas(x, y, bias, wq, wk, wv, wo, *, num_heads,
                     q_tile_target=256, k_tile_target=512):
    B, Lq, H = x.shape
    _, Lk, _ = y.shape
    assert H % num_heads == 0, "hidden size must be divisible by num_heads"
    d = H // num_heads
    scale = d ** (-0.5)

    # ---- one-time wrapper-side prep (plain XLA ops, not per grid step) ----
    def split_cols(wT):                        # (H, H) -> (num_heads, H, d)
        return jnp.transpose(wT.reshape(H, num_heads, d), (1, 0, 2))

    wqT_h = split_cols(wq.T * scale).astype(jnp.bfloat16)   # scale folded in
    wkT_h = split_cols(wk.T).astype(jnp.bfloat16)
    wvT_h = split_cols(wv.T).astype(jnp.bfloat16)
    woT_h = wo.T.reshape(num_heads, d, H).astype(jnp.bfloat16)

    xb = x.astype(jnp.bfloat16)
    yb = y.astype(jnp.bfloat16)
    bias_f32 = jnp.broadcast_to(bias.astype(jnp.float32), (B, 1, Lq, Lk))

    tq = _pick_tile(Lq, q_tile_target, 8)      # sublane-dim tile
    tk = _pick_tile(Lk, k_tile_target, 128)    # lane-dim tile (bias last dim)
    nk = Lk // tk
    multi_k = nk > 1
    grid = (B, Lq // tq, num_heads, nk)

    scratch_shapes = [pltpu.VMEM((tq, H), jnp.float32)]       # output accum
    if multi_k:
        scratch_shapes += [
            pltpu.VMEM((tq, d), jnp.bfloat16),   # q tile for current head
            pltpu.VMEM((tq, 1), jnp.float32),    # online-softmax running max
            pltpu.VMEM((tq, 1), jnp.float32),    # online-softmax running sum
            pltpu.VMEM((tq, d), jnp.float32),    # PV accumulator
        ]

    flops = 2 * B * (2 * Lq * H * H + 2 * Lk * H * H + 2 * Lq * Lk * H)
    transcendentals = B * num_heads * Lq * Lk
    bytes_accessed = ((xb.size + yb.size) * 2 + bias_f32.size * 4
                      + B * Lq * H * jnp.dtype(x.dtype).itemsize
                      + 4 * H * H * 2)

    return pl.pallas_call(
        _make_attention_kernel(multi_k),
        out_shape=jax.ShapeDtypeStruct((B, Lq, H), x.dtype),
        grid=grid,
        in_specs=[
            pl.BlockSpec((1, tq, H), lambda b, qi, h, ki: (b, qi, 0)),          # x
            pl.BlockSpec((1, tk, H), lambda b, qi, h, ki: (b, ki, 0)),          # y
            pl.BlockSpec((1, 1, tq, tk), lambda b, qi, h, ki: (b, 0, qi, ki)),  # bias
            pl.BlockSpec((1, H, d), lambda b, qi, h, ki: (h, 0, 0)),            # WqT*scale
            pl.BlockSpec((1, H, d), lambda b, qi, h, ki: (h, 0, 0)),            # WkT
            pl.BlockSpec((1, H, d), lambda b, qi, h, ki: (h, 0, 0)),            # WvT
            pl.BlockSpec((1, d, H), lambda b, qi, h, ki: (h, 0, 0)),            # WoT
        ],
        out_specs=pl.BlockSpec((1, tq, H), lambda b, qi, h, ki: (b, qi, 0)),
        scratch_shapes=scratch_shapes,
        compiler_params=pltpu.CompilerParams(
            dimension_semantics=("parallel", "parallel", "arbitrary", "arbitrary"),
            vmem_limit_bytes=48 * 1024 * 1024),
        cost_estimate=pl.CostEstimate(
            flops=int(flops),
            transcendentals=int(transcendentals),
            bytes_accessed=int(bytes_accessed)),
    )(xb, yb, bias_f32, wqT_h, wkT_h, wvT_h, woT_h)


def attention_reference(x, y, bias, wq, wk, wv, wo, *, num_heads):
    """Pure-JAX (f32) mirror of the PyTorch forward (attention_dropout = 0)."""
    B, Lq, H = x.shape
    _, Lk, _ = y.shape
    d = H // num_heads
    q = x @ wq.T
    k = y @ wk.T
    v = y @ wv.T

    def split(t, L):
        return t.reshape(B, L, num_heads, d).transpose(0, 2, 1, 3)

    qh, kh, vh = split(q, Lq), split(k, Lk), split(v, Lk)
    qh = qh * (d ** -0.5)
    logits = jnp.einsum('bhqd,bhkd->bhqk', qh, kh) + bias
    weights = jax.nn.softmax(logits, axis=-1)
    out = jnp.einsum('bhqk,bhkd->bhqd', weights, vh)
    out = out.transpose(0, 2, 1, 3).reshape(B, Lq, H)
    return out @ wo.T


def _run_case(key, B, Lq, Lk, H, NH, k_tile_target):
    kx, ky, kb, kq, kk, kv, ko = jax.random.split(key, 7)
    x = jax.random.normal(kx, (B, Lq, H), dtype=jnp.float32)
    y = jax.random.normal(ky, (B, Lk, H), dtype=jnp.float32)
    bias = jax.random.normal(kb, (B, 1, Lq, Lk), dtype=jnp.float32) * 0.1
    # nn.Linear(H, H, bias=False) weight shapes (out_features, in_features).
    wq = jax.random.normal(kq, (H, H), dtype=jnp.float32) * 0.02
    wk = jax.random.normal(kk, (H, H), dtype=jnp.float32) * 0.02
    wv = jax.random.normal(kv, (H, H), dtype=jnp.float32) * 0.02
    wo = jax.random.normal(ko, (H, H), dtype=jnp.float32) * 0.02

    out = attention_pallas(x, y, bias, wq, wk, wv, wo, num_heads=NH,
                           k_tile_target=k_tile_target)
    out = jax.block_until_ready(out)
    ref = attention_reference(x, y, bias, wq, wk, wv, wo, num_heads=NH)
    assert out.shape == (B, Lq, H)
    max_err = float(jnp.max(jnp.abs(out - ref)))
    # bf16 MXU operands + approx reciprocal -> compare at bf16-level tolerance.
    assert jnp.allclose(out, ref, atol=2e-3, rtol=2e-2), max_err


if __name__ == "__main__":
    key = jax.random.PRNGKey(0)
    k1, k2 = jax.random.split(key)

    # Case 1: small shapes consistent with the module (single-k-tile fast path):
    # batch=2, seq=8, hidden=32, heads=4.
    _run_case(k1, B=2, Lq=8, Lk=8, H=32, NH=4, k_tile_target=512)

    # Case 2: longer key sequence so the online-softmax (multi k-tile) path is
    # exercised as well.
    _run_case(k2, B=2, Lq=16, Lk=256, H=32, NH=4, k_tile_target=128)

    # TODO(synk): the incremental-decoding `cache` path (k/v concat) is plain
    #             JAX glue before the kernel and is not exercised here.

    print("KERNEL_OK")
</pallas_src>

<mosaic_0001>
module attributes {stable_mosaic.version = 11 : i64} {
  func.func @kernel(%arg0: i32, %arg1: i32, %arg2: i32, %arg3: i32, %arg4: memref<1x8x32xbf16, #tpu.memory_space<vmem>>, %arg5: memref<1x8x32xbf16, #tpu.memory_space<vmem>>, %arg6: memref<1x1x8x8xf32, #tpu.memory_space<vmem>>, %arg7: memref<1x32x8xbf16, #tpu.memory_space<vmem>>, %arg8: memref<1x32x8xbf16, #tpu.memory_space<vmem>>, %arg9: memref<1x32x8xbf16, #tpu.memory_space<vmem>>, %arg10: memref<1x8x32xbf16, #tpu.memory_space<vmem>>, %arg11: memref<1x8x32xf32, #tpu.memory_space<vmem>>, %arg12: memref<8x32xf32, #tpu.memory_space<vmem>>) attributes {dimension_semantics = [#tpu.dimension_semantics<parallel>, #tpu.dimension_semantics<parallel>, #tpu.dimension_semantics<arbitrary>, #tpu.dimension_semantics<arbitrary>], iteration_bounds = array<i64: 2, 1, 4, 1>, scalar_prefetch = 0 : i64, scratch_operands = 1 : i64, tpu.core_type = #tpu.core_type<tc>, window_params = [{transform_indices = @transform_0, window_bounds = array<i64: 1, 8, 32>}, {transform_indices = @transform_1, window_bounds = array<i64: 1, 8, 32>}, {transform_indices = @transform_2, window_bounds = array<i64: 1, 1, 8, 8>}, {transform_indices = @transform_3, window_bounds = array<i64: 1, 32, 8>}, {transform_indices = @transform_4, window_bounds = array<i64: 1, 32, 8>}, {transform_indices = @transform_5, window_bounds = array<i64: 1, 32, 8>}, {transform_indices = @transform_6, window_bounds = array<i64: 1, 8, 32>}, {transform_indices = @transform_7, window_bounds = array<i64: 1, 8, 32>}]} {
    %c0_i32 = arith.constant 0 : i32
    %0 = arith.cmpi eq, %arg2, %c0_i32 : i32
    %1 = arith.extui %0 : i1 to i32
    %c0_i32_0 = arith.constant 0 : i32
    %2 = arith.cmpi ne, %1, %c0_i32_0 : i32
    scf.if %2 {
      %cst_34 = arith.constant 0.000000e+00 : f32
      %45 = vector.broadcast %cst_34 : f32 to vector<8x32xf32>
      %c0_35 = arith.constant 0 : index
      %c0_36 = arith.constant 0 : index
      %46 = vector.load %arg12[%c0_35, %c0_36] : memref<8x32xf32, #tpu.memory_space<vmem>>, vector<8x32xf32>
      tpu.vector_store %arg12[%c0_35, %c0_36], %45 {strides = array<i32>} : memref<8x32xf32, #tpu.memory_space<vmem>>, vector<8x32xf32>,
    } else {
    }
    %c0 = arith.constant 0 : index
    %c0_1 = arith.constant 0 : index
    %c0_2 = arith.constant 0 : index
    %3 = vector.load %arg4[%c0, %c0_1, %c0_2] : memref<1x8x32xbf16, #tpu.memory_space<vmem>>, vector<1x8x32xbf16>
    %4 = vector.shape_cast %3 : vector<1x8x32xbf16> to vector<8x32xbf16>
    %c0_3 = arith.constant 0 : index
    %c0_4 = arith.constant 0 : index
    %c0_5 = arith.constant 0 : index
    %5 = vector.load %arg7[%c0_3, %c0_4, %c0_5] : memref<1x32x8xbf16, #tpu.memory_space<vmem>>, vector<1x32x8xbf16>
    %6 = vector.shape_cast %5 : vector<1x32x8xbf16> to vector<32x8xbf16>
    %cst = arith.constant dense<0.000000e+00> : vector<8x8xf32>
    %7 = tpu.matmul %4, %6, %cst {dimension_numbers = #tpu.dot_dimension_numbers<[1], [0], [0], [1], [0, 0, 1, 1], [], []>} : vector<8x32xbf16>, vector<32x8xbf16>, vector<8x8xf32> -> vector<8x8xf32>
    %8 = arith.truncf %7 : vector<8x8xf32> to vector<8x8xbf16>
    %c0_6 = arith.constant 0 : index
    %c0_7 = arith.constant 0 : index
    %c0_8 = arith.constant 0 : index
    %9 = vector.load %arg5[%c0_6, %c0_7, %c0_8] : memref<1x8x32xbf16, #tpu.memory_space<vmem>>, vector<1x8x32xbf16>
    %10 = vector.shape_cast %9 : vector<1x8x32xbf16> to vector<8x32xbf16>
    %c0_9 = arith.constant 0 : index
    %c0_10 = arith.constant 0 : index
    %c0_11 = arith.constant 0 : index
    %11 = vector.load %arg8[%c0_9, %c0_10, %c0_11] : memref<1x32x8xbf16, #tpu.memory_space<vmem>>, vector<1x32x8xbf16>
    %12 = vector.shape_cast %11 : vector<1x32x8xbf16> to vector<32x8xbf16>
    %cst_12 = arith.constant dense<0.000000e+00> : vector<8x8xf32>
    %13 = tpu.matmul %10, %12, %cst_12 {dimension_numbers = #tpu.dot_dimension_numbers<[1], [0], [0], [1], [0, 0, 1, 1], [], []>} : vector<8x32xbf16>, vector<32x8xbf16>, vector<8x8xf32> -> vector<8x8xf32>
    %14 = arith.truncf %13 : vector<8x8xf32> to vector<8x8xbf16>
    %c0_13 = arith.constant 0 : index
    %c0_14 = arith.constant 0 : index
    %c0_15 = arith.constant 0 : index
    %15 = vector.load %arg9[%c0_13, %c0_14, %c0_15] : memref<1x32x8xbf16, #tpu.memory_space<vmem>>, vector<1x32x8xbf16>
    %16 = vector.shape_cast %15 : vector<1x32x8xbf16> to vector<32x8xbf16>
    %cst_16 = arith.constant dense<0.000000e+00> : vector<8x8xf32>
    %17 = tpu.matmul %10, %16, %cst_16 {dimension_numbers = #tpu.dot_dimension_numbers<[1], [0], [0], [1], [0, 0, 1, 1], [], []>} : vector<8x32xbf16>, vector<32x8xbf16>, vector<8x8xf32> -> vector<8x8xf32>
    %18 = arith.truncf %17 : vector<8x8xf32> to vector<8x8xbf16>
    "tpu.trace_start"() <{level = 10 : i32, message = "qd,kd->qk"}> : () -> ()
    %cst_17 = arith.constant dense<0.000000e+00> : vector<8x8xf32>
    %19 = tpu.matmul %8, %14, %cst_17 {dimension_numbers = #tpu.dot_dimension_numbers<[1], [1], [0], [0], [0, 0, 1, 0], [], []>} : vector<8x8xbf16>, vector<8x8xbf16>, vector<8x8xf32> -> vector<8x8xf32>
    "tpu.trace_stop"() : () -> ()
    %c0_18 = arith.constant 0 : index
    %c0_19 = arith.constant 0 : index
    %c0_20 = arith.constant 0 : index
    %c0_21 = arith.constant 0 : index
    %20 = vector.load %arg6[%c0_18, %c0_19, %c0_20, %c0_21] : memref<1x1x8x8xf32, #tpu.memory_space<vmem>>, vector<1x1x8x8xf32>
    %21 = vector.shape_cast %20 : vector<1x1x8x8xf32> to vector<8x8xf32>
    %22 = arith.addf %19, %21 : vector<8x8xf32>
    %cst_22 = arith.constant dense<0xFF800000> : vector<8xf32>
    %23 = vector.multi_reduction <maximumf>, %22, %cst_22 [1] : vector<8x8xf32> to vector<8xf32>
    %24 = vector.shape_cast %23 : vector<8xf32> to vector<8x1xf32>
    %25 = vector.broadcast %24 : vector<8x1xf32> to vector<8x8xf32>
    %26 = arith.subf %22, %25 : vector<8x8xf32>
    %27 = math.exp %26 : vector<8x8xf32>
    %cst_23 = arith.constant dense<0.000000e+00> : vector<8xf32>
    %28 = vector.multi_reduction <add>, %27, %cst_23 [1] : vector<8x8xf32> to vector<8xf32>
    %29 = vector.shape_cast %28 : vector<8xf32> to vector<8x1xf32>
    %30 = arith.truncf %27 : vector<8x8xf32> to vector<8x8xbf16>
    %cst_24 = arith.constant dense<0.000000e+00> : vector<8x8xf32>
    %31 = tpu.matmul %30, %18, %cst_24 {dimension_numbers = #tpu.dot_dimension_numbers<[1], [0], [0], [1], [0, 0, 1, 1], [], []>} : vector<8x8xbf16>, vector<8x8xbf16>, vector<8x8xf32> -> vector<8x8xf32>
    %32 = tpu.reciprocal %29 {approx = true} : vector<8x1xf32> -> vector<8x1xf32>
    %33 = vector.broadcast %32 : vector<8x1xf32> to vector<8x8xf32>
    %34 = arith.mulf %31, %33 : vector<8x8xf32>
    %35 = arith.truncf %34 : vector<8x8xf32> to vector<8x8xbf16>
    %c0_25 = arith.constant 0 : index
    %c0_26 = arith.constant 0 : index
    %36 = vector.load %arg12[%c0_25, %c0_26] : memref<8x32xf32, #tpu.memory_space<vmem>>, vector<8x32xf32>
    %c0_27 = arith.constant 0 : index
    %c0_28 = arith.constant 0 : index
    %c0_29 = arith.constant 0 : index
    %37 = vector.load %arg10[%c0_27, %c0_28, %c0_29] : memref<1x8x32xbf16, #tpu.memory_space<vmem>>, vector<1x8x32xbf16>
    %38 = vector.shape_cast %37 : vector<1x8x32xbf16> to vector<8x32xbf16>
    %cst_30 = arith.constant dense<0.000000e+00> : vector<8x32xf32>
    %39 = tpu.matmul %35, %38, %cst_30 {dimension_numbers = #tpu.dot_dimension_numbers<[1], [0], [0], [1], [0, 0, 1, 1], [], []>} : vector<8x8xbf16>, vector<8x32xbf16>, vector<8x32xf32> -> vector<8x32xf32>
    %40 = arith.addf %36, %39 : vector<8x32xf32>
    %c0_31 = arith.constant 0 : index
    %c0_32 = arith.constant 0 : index
    %41 = vector.load %arg12[%c0_31, %c0_32] : memref<8x32xf32, #tpu.memory_space<vmem>>, vector<8x32xf32>
    tpu.vector_store %arg12[%c0_31, %c0_32], %40 {strides = array<i32>} : memref<8x32xf32, #tpu.memory_space<vmem>>, vector<8x32xf32>,
    %c3_i32 = arith.constant 3 : i32
    %42 = arith.cmpi eq, %arg2, %c3_i32 : i32
    %43 = arith.extui %42 : i1 to i32
    %c0_i32_33 = arith.constant 0 : i32
    %44 = arith.cmpi ne, %43, %c0_i32_33 : i32
    scf.if %44 {
      %c0_34 = arith.constant 0 : index
      %c0_35 = arith.constant 0 : index
      %45 = vector.load %arg12[%c0_34, %c0_35] : memref<8x32xf32, #tpu.memory_space<vmem>>, vector<8x32xf32>
      %c0_36 = arith.constant 0 : index
      %c0_37 = arith.constant 0 : index
      %c0_38 = arith.constant 0 : index
      %46 = vector.load %arg11[%c0_36, %c0_37, %c0_38] : memref<1x8x32xf32, #tpu.memory_space<vmem>>, vector<1x8x32xf32>
      %47 = vector.shape_cast %46 : vector<1x8x32xf32> to vector<8x32xf32>
      %48 = vector.shape_cast %45 : vector<8x32xf32> to vector<1x8x32xf32>
      tpu.vector_store %arg11[%c0_36, %c0_37, %c0_38], %48 {strides = array<i32>} : memref<1x8x32xf32, #tpu.memory_space<vmem>>, vector<1x8x32xf32>,
    } else {
    }
    return
  }
  func.func @transform_0(%arg0: i32, %arg1: i32, %arg2: i32, %arg3: i32) -> (i32, i32, i32) {
    %c0_i32 = arith.constant 0 : i32
    %c0_i32_0 = arith.constant 0 : i32
    return %arg0, %arg1, %c0_i32 : i32, i32, i32
  }
  func.func @transform_1(%arg0: i32, %arg1: i32, %arg2: i32, %arg3: i32) -> (i32, i32, i32) {
    %c0_i32 = arith.constant 0 : i32
    %c0_i32_0 = arith.constant 0 : i32
    return %arg0, %arg3, %c0_i32 : i32, i32, i32
  }
  func.func @transform_2(%arg0: i32, %arg1: i32, %arg2: i32, %arg3: i32) -> (i32, i32, i32, i32) {
    %c0_i32 = arith.constant 0 : i32
    %c0_i32_0 = arith.constant 0 : i32
    return %arg0, %c0_i32, %arg1, %arg3 : i32, i32, i32, i32
  }
  func.func @transform_3(%arg0: i32, %arg1: i32, %arg2: i32, %arg3: i32) -> (i32, i32, i32) {
    %c0_i32 = arith.constant 0 : i32
    %c0_i32_0 = arith.constant 0 : i32
    %c0_i32_1 = arith.constant 0 : i32
    return %arg2, %c0_i32, %c0_i32_0 : i32, i32, i32
  }
  func.func @transform_4(%arg0: i32, %arg1: i32, %arg2: i32, %arg3: i32) -> (i32, i32, i32) {
    %c0_i32 = arith.constant 0 : i32
    %c0_i32_0 = arith.constant 0 : i32
    %c0_i32_1 = arith.constant 0 : i32
    return %arg2, %c0_i32, %c0_i32_0 : i32, i32, i32
  }
  func.func @transform_5(%arg0: i32, %arg1: i32, %arg2: i32, %arg3: i32) -> (i32, i32, i32) {
    %c0_i32 = arith.constant 0 : i32
    %c0_i32_0 = arith.constant 0 : i32
    %c0_i32_1 = arith.constant 0 : i32
    return %arg2, %c0_i32, %c0_i32_0 : i32, i32, i32
  }
  func.func @transform_6(%arg0: i32, %arg1: i32, %arg2: i32, %arg3: i32) -> (i32, i32, i32) {
    %c0_i32 = arith.constant 0 : i32
    %c0_i32_0 = arith.constant 0 : i32
    %c0_i32_1 = arith.constant 0 : i32
    return %arg2, %c0_i32, %c0_i32_0 : i32, i32, i32
  }
  func.func @transform_7(%arg0: i32, %arg1: i32, %arg2: i32, %arg3: i32) -> (i32, i32, i32) {
    %c0_i32 = arith.constant 0 : i32
    %c0_i32_0 = arith.constant 0 : i32
    return %arg0, %arg1, %c0_i32 : i32, i32, i32
  }
}

</mosaic_0001>

<llo_original>
// kernel: tpu_custom_call.1
$region0: #{tpu_custom_call.1}
  #allocation0 [shape = 'u32[]', space=smem, size = 0x4, offset = 0x4, fixed_abs, tag = 'smem constant byte address 0x4 - core index']
  #allocation1 [shape = 'u32[144,128]{1,0:T(1,128)}', space=vmem, size = 0x12000, scoped, tag = 'internal scratch']
  #allocation2 [shape = 'f32[8,32]{1,0:T(8,128)}', space=vmem, size = 0x1000, scoped, tag = 'scratch operand']
  %s0 = inlined_call_operand.vmem [shape: bf16[2,8,32], index: 0, kind: input, shape index: {}]
  %s1 = inlined_call_operand.vmem [shape: bf16[2,8,32], index: 1, kind: input, shape index: {}]
  %s2 = inlined_call_operand.vmem [shape: f32[2,1,8,8], index: 2, kind: input, shape index: {}]
  %s3 = inlined_call_operand.vmem [shape: bf16[4,32,8], index: 3, kind: input, shape index: {}]
  %s4 = inlined_call_operand.vmem [shape: bf16[4,32,8], index: 4, kind: input, shape index: {}]
  %s5 = inlined_call_operand.vmem [shape: bf16[4,32,8], index: 5, kind: input, shape index: {}]
  %s6 = inlined_call_operand.vmem [shape: bf16[4,8,32], index: 6, kind: input, shape index: {}]
  %s7 = inlined_call_operand.hbm [shape: f32[2,8,32], index: 7, kind: output, shape index: {}]
  %s8 = sld [smem:[#allocation0]]
  $region69: #{tpu_custom_call.1} parent=0
    _
  %s10 = ssub.s32 1, %s8
  %s11 = scalar_select 0, %s10, %s8
  $region1: #{tpu_custom_call.1} parent=0
    #allocation3 [shape = 'u8[8192]{0}', space=vmem, size = 0x2000, scoped, tag = 'output window, operand 0']
    #allocation4 [shape = 's32[2]{0}', space=sflag, size = 0x8, scoped, tag = 'scoped memory for tpu_custom_call.1']
    %12 = vsyncpa [#allocation4], 0
    %s13 = scalar_lea.sflag [#allocation4], 1
    %14 = vsyncpa %s13, 0
    loop: start=0, step=1, limit=10
    $region2: #{tpu_custom_call.1} parent=1 // loop_pre_header
      _
    $region3: #{tpu_custom_call.1} parent=1 // loop_header
      %s16 = sphi 0, %s20
      %p17 = scmp.ge.s32.totalorder %s16, 10
      %s23 = sphi 0, %s49
      %s24 = sphi 0, %s45
      %s25 = sphi 0, %s41
      %s26 = sphi 0, %s37
      %s27 = sphi 0, %s23
      %s28 = sphi 0, %s24
      %s29 = sphi 0, %s25
      %s30 = sphi 0, %s26
      %s31 = sphi 0, %s27
      %s32 = sphi 0, %s28
      %s33 = sphi 0, %s29
      %s34 = sphi 0, %s30
      %s54 = sphi 0, %s56
      %s57 = sphi 0, %s54
      %s58 = sphi 0, %s57
      %s74 = sphi 0, %s58
      %s82 = sphi 0, %s84
      %s85 = sphi 0, %s82
      %s86 = sphi 0, %s85
      %s102 = sphi 0, %s86
      %s112 = sphi 0, %s114
      %s115 = sphi 0, %s112
      %s116 = sphi 0, %s115
      %s132 = sphi 0, %s116
      %s138 = sphi 0, %s140
      %s141 = sphi 0, %s138
      %s142 = sphi 0, %s141
      %s158 = sphi 0, %s142
      %s164 = sphi 0, %s166
      %s167 = sphi 0, %s164
      %s168 = sphi 0, %s167
      %s184 = sphi 0, %s168
      %s190 = sphi 0, %s192
      %s193 = sphi 0, %s190
      %s194 = sphi 0, %s193
      %s210 = sphi 0, %s194
      %s216 = sphi 0, %s218
      %s219 = sphi 0, %s216
      %s220 = sphi 0, %s219
      %s236 = sphi 0, %s220
      %s244 = sphi 0, %s246
      %s247 = sphi 0, %s244
      %s248 = sphi 0, %s247
      %s264 = sphi 0, %s248
    $region4: #{tpu_custom_call.1} parent=1 // loop_header_branch
      %19 = sbr.rel (%p17) target = $region8
    $region5: #{tpu_custom_call.1} parent=1 // loop_body
      %s21 = ssub.s32 %s16, 1
      %s22 = ssub.s32 %s16, 2
      %s35 = sadd.s32 1, %s26
      %p36 = scmp.ge.s32.totalorder %s35, 1
      %s37 = scalar_select %p36, 0, %s35
      %s38 = sadd.s32 1, %s25
      %s39 = scalar_select %p36, %s38, %s25
      %p40 = scmp.ge.s32.totalorder %s39, 4
      %s41 = scalar_select %p40, 0, %s39
      %s42 = sadd.s32 1, %s24
      %s43 = scalar_select %p40, %s42, %s24
      %p44 = scmp.ge.s32.totalorder %s43, 1
      %s45 = scalar_select %p44, 0, %s43
      %s46 = sadd.s32 1, %s23
      %s47 = scalar_select %p44, %s46, %s23
      %p48 = scmp.ge.s32.totalorder %s47, 2
      %s49 = scalar_select %p48, 0, %s47
      %s50 = ssub.s32 %s23, %s49
      %s51 = ssub.s32 %s24, %s45
      %s52 = sor.u32 %s50, %s51
      %p53 = scmp.eq.s32.totalorder %s52, 0
      %s55 = sadd.s32 %s54, 1
      %s56 = scalar_select %p53, %s54, %s55
      %p59 = pneg %p53
      %p60 = scmp.eq.s32.totalorder %s16, 7
      %p61 = por %p59, %p60
      %p62 = scmp.ne.s32.totalorder %s54, %s57
      %p63 = scmp.eq.s32.totalorder %s16, 0
      %p64 = por %p62, %p63
      %p65 = scmp.ne.s32.totalorder %s54, %s57
      %p66 = scmp.eq.s32.totalorder %s21, 7
      %p67 = por %p65, %p66
      %p68 = scmp.ne.s32.totalorder %s57, %s58
      %p69 = scmp.eq.s32.totalorder %s21, 0
      %p70 = por %p68, %p69
      %p71 = scmp.ne.s32.totalorder %s57, %s58
      %p72 = scmp.eq.s32.totalorder %s22, 7
      %p73 = por %p71, %p72
      %p75 = scmp.ne.s32.totalorder %s58, %s74
      %p76 = scmp.eq.s32.totalorder %s22, 0
      %p77 = por %p75, %p76
      %s78 = ssub.s32 %s23, %s49
      %s79 = ssub.s32 %s26, %s37
      %s80 = sor.u32 %s78, %s79
      %p81 = scmp.eq.s32.totalorder %s80, 0
      %s83 = sadd.s32 %s82, 1
      %s84 = scalar_select %p81, %s82, %s83
      %p87 = pneg %p81
      %p88 = scmp.eq.s32.totalorder %s16, 7
      %p89 = por %p87, %p88
      %p90 = scmp.ne.s32.totalorder %s82, %s85
      %p91 = scmp.eq.s32.totalorder %s16, 0
      %p92 = por %p90, %p91
      %p93 = scmp.ne.s32.totalorder %s82, %s85
      %p94 = scmp.eq.s32.totalorder %s21, 7
      %p95 = por %p93, %p94
      %p96 = scmp.ne.s32.totalorder %s85, %s86
      %p97 = scmp.eq.s32.totalorder %s21, 0
      %p98 = por %p96, %p97
      %p99 = scmp.ne.s32.totalorder %s85, %s86
      %p100 = scmp.eq.s32.totalorder %s22, 7
      %p101 = por %p99, %p100
      %p103 = scmp.ne.s32.totalorder %s86, %s102
      %p104 = scmp.eq.s32.totalorder %s22, 0
      %p105 = por %p103, %p104
      %s106 = ssub.s32 %s23, %s49
      %s107 = ssub.s32 %s24, %s45
      %s108 = sor.u32 %s106, %s107
      %s109 = ssub.s32 %s26, %s37
      %s110 = sor.u32 %s108, %s109
      %p111 = scmp.eq.s32.totalorder %s110, 0
      %s113 = sadd.s32 %s112, 1
      %s114 = scalar_select %p111, %s112, %s113
      %p117 = pneg %p111
      %p118 = scmp.eq.s32.totalorder %s16, 7
      %p119 = por %p117, %p118
      %p120 = scmp.ne.s32.totalorder %s112, %s115
      %p121 = scmp.eq.s32.totalorder %s16, 0
      %p122 = por %p120, %p121
      %p123 = scmp.ne.s32.totalorder %s112, %s115
      %p124 = scmp.eq.s32.totalorder %s21, 7
      %p125 = por %p123, %p124
      %p126 = scmp.ne.s32.totalorder %s115, %s116
      %p127 = scmp.eq.s32.totalorder %s21, 0
      %p128 = por %p126, %p127
      %p129 = scmp.ne.s32.totalorder %s115, %s116
      %p130 = scmp.eq.s32.totalorder %s22, 7
      %p131 = por %p129, %p130
      %p133 = scmp.ne.s32.totalorder %s116, %s132
      %p134 = scmp.eq.s32.totalorder %s22, 0
      %p135 = por %p133, %p134
      %s136 = ssub.s32 %s25, %s41
      %p137 = scmp.eq.s32.totalorder %s136, 0
      %s139 = sadd.s32 %s138, 1
      %s140 = scalar_select %p137, %s138, %s139
      %p143 = pneg %p137
      %p144 = scmp.eq.s32.totalorder %s16, 7
      %p145 = por %p143, %p144
      %p146 = scmp.ne.s32.totalorder %s138, %s141
      %p147 = scmp.eq.s32.totalorder %s16, 0
      %p148 = por %p146, %p147
      %p149 = scmp.ne.s32.totalorder %s138, %s141
      %p150 = scmp.eq.s32.totalorder %s21, 7
      %p151 = por %p149, %p150
      %p152 = scmp.ne.s32.totalorder %s141, %s142
      %p153 = scmp.eq.s32.totalorder %s21, 0
      %p154 = por %p152, %p153
      %p155 = scmp.ne.s32.totalorder %s141, %s142
      %p156 = scmp.eq.s32.totalorder %s22, 7
      %p157 = por %p155, %p156
      %p159 = scmp.ne.s32.totalorder %s142, %s158
      %p160 = scmp.eq.s32.totalorder %s22, 0
      %p161 = por %p159, %p160
      %s162 = ssub.s32 %s25, %s41
      %p163 = scmp.eq.s32.totalorder %s162, 0
      %s165 = sadd.s32 %s164, 1
      %s166 = scalar_select %p163, %s164, %s165
      %p169 = pneg %p163
      %p170 = scmp.eq.s32.totalorder %s16, 7
      %p171 = por %p169, %p170
      %p172 = scmp.ne.s32.totalorder %s164, %s167
      %p173 = scmp.eq.s32.totalorder %s16, 0
      %p174 = por %p172, %p173
      %p175 = scmp.ne.s32.totalorder %s164, %s167
      %p176 = scmp.eq.s32.totalorder %s21, 7
      %p177 = por %p175, %p176
      %p178 = scmp.ne.s32.totalorder %s167, %s168
      %p179 = scmp.eq.s32.totalorder %s21, 0
      %p180 = por %p178, %p179
      %p181 = scmp.ne.s32.totalorder %s167, %s168
      %p182 = scmp.eq.s32.totalorder %s22, 7
      %p183 = por %p181, %p182
      %p185 = scmp.ne.s32.totalorder %s168, %s184
      %p186 = scmp.eq.s32.totalorder %s22, 0
      %p187 = por %p185, %p186
      %s188 = ssub.s32 %s25, %s41
      %p189 = scmp.eq.s32.totalorder %s188, 0
      %s191 = sadd.s32 %s190, 1
      %s192 = scalar_select %p189, %s190, %s191
      %p195 = pneg %p189
      %p196 = scmp.eq.s32.totalorder %s16, 7
      %p197 = por %p195, %p196
      %p198 = scmp.ne.s32.totalorder %s190, %s193
      %p199 = scmp.eq.s32.totalorder %s16, 0
      %p200 = por %p198, %p199
      %p201 = scmp.ne.s32.totalorder %s190, %s193
      %p202 = scmp.eq.s32.totalorder %s21, 7
      %p203 = por %p201, %p202
      %p204 = scmp.ne.s32.totalorder %s193, %s194
      %p205 = scmp.eq.s32.totalorder %s21, 0
      %p206 = por %p204, %p205
      %p207 = scmp.ne.s32.totalorder %s193, %s194
      %p208 = scmp.eq.s32.totalorder %s22, 7
      %p209 = por %p207, %p208
      %p211 = scmp.ne.s32.totalorder %s194, %s210
      %p212 = scmp.eq.s32.totalorder %s22, 0
      %p213 = por %p211, %p212
      %s214 = ssub.s32 %s25, %s41
      %p215 = scmp.eq.s32.totalorder %s214, 0
      %s217 = sadd.s32 %s216, 1
      %s218 = scalar_select %p215, %s216, %s217
      %p221 = pneg %p215
      %p222 = scmp.eq.s32.totalorder %s16, 7
      %p223 = por %p221, %p222
      %p224 = scmp.ne.s32.totalorder %s216, %s219
      %p225 = scmp.eq.s32.totalorder %s16, 0
      %p226 = por %p224, %p225
      %p227 = scmp.ne.s32.totalorder %s216, %s219
      %p228 = scmp.eq.s32.totalorder %s21, 7
      %p229 = por %p227, %p228
      %p230 = scmp.ne.s32.totalorder %s219, %s220
      %p231 = scmp.eq.s32.totalorder %s21, 0
      %p232 = por %p230, %p231
      %p233 = scmp.ne.s32.totalorder %s219, %s220
      %p234 = scmp.eq.s32.totalorder %s22, 7
      %p235 = por %p233, %p234
      %p237 = scmp.ne.s32.totalorder %s220, %s236
      %p238 = scmp.eq.s32.totalorder %s22, 0
      %p239 = por %p237, %p238
      %s240 = ssub.s32 %s23, %s49
      %s241 = ssub.s32 %s24, %s45
      %s242 = sor.u32 %s240, %s241
      %p243 = scmp.eq.s32.totalorder %s242, 0
      %s245 = sadd.s32 %s244, 1
      %s246 = scalar_select %p243, %s244, %s245
      %p249 = pneg %p243
      %p250 = scmp.eq.s32.totalorder %s16, 7
      %p251 = por %p249, %p250
      %p252 = scmp.ne.s32.totalorder %s244, %s247
      %p253 = scmp.eq.s32.totalorder %s16, 0
      %p254 = por %p252, %p253
      %p255 = scmp.ne.s32.totalorder %s244, %s247
      %p256 = scmp.eq.s32.totalorder %s21, 7
      %p257 = por %p255, %p256
      %p258 = scmp.ne.s32.totalorder %s247, %s248
      %p259 = scmp.eq.s32.totalorder %s21, 0
      %p260 = por %p258, %p259
      %p261 = scmp.ne.s32.totalorder %s247, %s248
      %p262 = scmp.eq.s32.totalorder %s22, 7
      %p263 = por %p261, %p262
      %p265 = scmp.ne.s32.totalorder %s248, %s264
      %p266 = scmp.eq.s32.totalorder %s22, 0
      %p267 = por %p265, %p266
      %p268 = scmp.le.s32.totalorder 1, %s16
      %p269 = scmp.lt.s32.totalorder %s16, 9
      %p270 = pnand %p268, %p269
      %p271 = pneg %p270
      // Predicated region
      $region9: #{tpu_custom_call.1} parent=5 // pred_check
        _
      $region10: #{tpu_custom_call.1} parent=5 // pred_check_branch
        %273 = sbr.rel (%p270) target = $region12
      $region11: #{tpu_custom_call.1} parent=5 // pred_region
        %s274 = ssub.s32 %s16, 1
      $region12: #{tpu_custom_call.1} parent=5 // pred_fallthru
        _
      %p275 = scmp.lt.s32.totalorder %s16, 8
      // Predicated region
      $region13: #{tpu_custom_call.1} parent=5 // pred_check
        %p276 = pneg %p275
      $region14: #{tpu_custom_call.1} parent=5 // pred_check_branch
        %278 = sbr.rel (%p276) target = $region16
      $region15: #{tpu_custom_call.1} parent=5 // pred_region
        // Predicated region
        $region17: #{tpu_custom_call.1} parent=15 // pred_check
          %p279 = pneg %p64
        $region18: #{tpu_custom_call.1} parent=15 // pred_check_branch
          %281 = sbr.rel (%p279) target = $region20
        $region19: #{tpu_custom_call.1} parent=15 // pred_region
          %p282 = scmp.lt.s32.totalorder %s23, 1
          %s283 = scalar_select %p282, %s23, 1
          %p284 = scmp.lt.s32.totalorder %s24, 0
          %s285 = scalar_select %p284, %s24, 0
          %s286 = sadd.s32 %s285, %s283
          %s287 = smul.addr %s286, 4
          %s288 = scalar_lea.vmem %s0, %s287
        $region20: #{tpu_custom_call.1} parent=15 // pred_fallthru
          _
        // Predicated region
        $region21: #{tpu_custom_call.1} parent=15 // pred_check
          %p289 = pneg %p92
        $region22: #{tpu_custom_call.1} parent=15 // pred_check_branch
          %291 = sbr.rel (%p289) target = $region24
        $region23: #{tpu_custom_call.1} parent=15 // pred_region
          %p292 = scmp.lt.s32.totalorder %s23, 1
          %s293 = scalar_select %p292, %s23, 1
          %p294 = scmp.lt.s32.totalorder %s26, 0
          %s295 = scalar_select %p294, %s26, 0
          %s296 = sadd.s32 %s295, %s293
          %s297 = smul.addr %s296, 4
          %s298 = scalar_lea.vmem %s1, %s297
        $region24: #{tpu_custom_call.1} parent=15 // pred_fallthru
          _
        // Predicated region
        $region25: #{tpu_custom_call.1} parent=15 // pred_check
          %p299 = pneg %p122
        $region26: #{tpu_custom_call.1} parent=15 // pred_check_branch
          %301 = sbr.rel (%p299) target = $region28
        $region27: #{tpu_custom_call.1} parent=15 // pred_region
          %p302 = scmp.lt.s32.totalorder %s23, 1
          %s303 = scalar_select %p302, %s23, 1
          %p304 = scmp.lt.s32.totalorder %s24, 0
          %s305 = scalar_select %p304, %s24, 0
          %p306 = scmp.lt.s32.totalorder %s26, 0
          %s307 = scalar_select %p306, %s26, 0
          %s308 = sadd.s32 %s307, %s305
          %s309 = sadd.s32 %s308, %s303
          %s310 = smul.addr %s309, 8
          %s311 = scalar_lea.vmem %s2, %s310
        $region28: #{tpu_custom_call.1} parent=15 // pred_fallthru
          _
        // Predicated region
        $region29: #{tpu_custom_call.1} parent=15 // pred_check
          %p312 = pneg %p148
        $region30: #{tpu_custom_call.1} parent=15 // pred_check_branch
          %314 = sbr.rel (%p312) target = $region32
        $region31: #{tpu_custom_call.1} parent=15 // pred_region
          %p315 = scmp.lt.s32.totalorder %s25, 3
          %s316 = scalar_select %p315, %s25, 3
          %s317 = smul.addr %s316, 4
          %s318 = smul.addr %s317, 4
          %s319 = scalar_lea.vmem %s3, %s318
        $region32: #{tpu_custom_call.1} parent=15 // pred_fallthru
          _
        // Predicated region
        $region33: #{tpu_custom_call.1} parent=15 // pred_check
          %p320 = pneg %p174
        $region34: #{tpu_custom_call.1} parent=15 // pred_check_branch
          %322 = sbr.rel (%p320) target = $region36
        $region35: #{tpu_custom_call.1} parent=15 // pred_region
          %p323 = scmp.lt.s32.totalorder %s25, 3
          %s324 = scalar_select %p323, %s25, 3
          %s325 = smul.addr %s324, 4
          %s326 = smul.addr %s325, 4
          %s327 = scalar_lea.vmem %s4, %s326
        $region36: #{tpu_custom_call.1} parent=15 // pred_fallthru
          _
        // Predicated region
        $region37: #{tpu_custom_call.1} parent=15 // pred_check
          %p328 = pneg %p200
        $region38: #{tpu_custom_call.1} parent=15 // pred_check_branch
          %330 = sbr.rel (%p328) target = $region40
        $region39: #{tpu_custom_call.1} parent=15 // pred_region
          %p331 = scmp.lt.s32.totalorder %s25, 3
          %s332 = scalar_select %p331, %s25, 3
          %s333 = smul.addr %s332, 4
          %s334 = smul.addr %s333, 4
          %s335 = scalar_lea.vmem %s5, %s334
        $region40: #{tpu_custom_call.1} parent=15 // pred_fallthru
          _
        // Predicated region
        $region41: #{tpu_custom_call.1} parent=15 // pred_check
          %p336 = pneg %p226
        $region42: #{tpu_custom_call.1} parent=15 // pred_check_branch
          %338 = sbr.rel (%p336) target = $region44
        $region43: #{tpu_custom_call.1} parent=15 // pred_region
          %p339 = scmp.lt.s32.totalorder %s25, 3
          %s340 = scalar_select %p339, %s25, 3
          %s341 = smul.addr %s340, 4
          %s342 = scalar_lea.vmem %s6, %s341
        $region44: #{tpu_custom_call.1} parent=15 // pred_fallthru
          _
      $region16: #{tpu_custom_call.1} parent=5 // pred_fallthru
        _
      %p343 = scmp.le.s32.totalorder 1, %s16
      %p344 = scmp.lt.s32.totalorder %s16, 9
      %p345 = pnand %p343, %p344
      %p346 = pneg %p345
      // Predicated region
      $region45: #{tpu_custom_call.1} parent=5 // pred_check
        _
      $region46: #{tpu_custom_call.1} parent=5 // pred_check_branch
        %348 = sbr.rel (%p345) target = $region48
      $region47: #{tpu_custom_call.1} parent=5 // pred_region
        %s349 = ssub.s32 %s16, 1
        %p350 = scmp.lt.s32.totalorder %s27, 1
        %s351 = scalar_select %p350, %s27, 1
        %p352 = scmp.lt.s32.totalorder %s28, 0
        %s353 = scalar_select %p352, %s28, 0
        %s354 = sadd.s32 %s353, %s351
        %s355 = smul.addr %s354, 4
        %s356 = scalar_lea.vmem %s0, %s355
        %p357 = pneg %p70
        %p358 = pneg %p67
        %p359 = scmp.lt.s32.totalorder %s27, 1
        %s360 = scalar_select %p359, %s27, 1
        %p361 = scmp.lt.s32.totalorder %s30, 0
        %s362 = scalar_select %p361, %s30, 0
        %s363 = sadd.s32 %s362, %s360
        %s364 = smul.addr %s363, 4
        %s365 = scalar_lea.vmem %s1, %s364
        %p366 = pneg %p98
        %p367 = pneg %p95
        %p368 = scmp.lt.s32.totalorder %s27, 1
        %s369 = scalar_select %p368, %s27, 1
        %p370 = scmp.lt.s32.totalorder %s28, 0
        %s371 = scalar_select %p370, %s28, 0
        %p372 = scmp.lt.s32.totalorder %s30, 0
        %s373 = scalar_select %p372, %s30, 0
        %s374 = sadd.s32 %s373, %s371
        %s375 = sadd.s32 %s374, %s369
        %s376 = smul.addr %s375, 8
        %s377 = scalar_lea.vmem %s2, %s376
        %p378 = pneg %p128
        %p379 = pneg %p125
        %p380 = scmp.lt.s32.totalorder %s29, 3
        %s381 = scalar_select %p380, %s29, 3
        %s382 = smul.addr %s381, 4
        %s383 = smul.addr %s382, 4
        %s384 = scalar_lea.vmem %s3, %s383
        %p385 = pneg %p154
        %p386 = pneg %p151
        %p387 = scmp.lt.s32.totalorder %s29, 3
        %s388 = scalar_select %p387, %s29, 3
        %s389 = smul.addr %s388, 4
        %s390 = smul.addr %s389, 4
        %s391 = scalar_lea.vmem %s4, %s390
        %p392 = pneg %p180
        %p393 = pneg %p177
        %p394 = scmp.lt.s32.totalorder %s29, 3
        %s395 = scalar_select %p394, %s29, 3
        %s396 = smul.addr %s395, 4
        %s397 = smul.addr %s396, 4
        %s398 = scalar_lea.vmem %s5, %s397
        %p399 = pneg %p206
        %p400 = pneg %p203
        %p401 = scmp.lt.s32.totalorder %s29, 3
        %s402 = scalar_select %p401, %s29, 3
        %s403 = smul.addr %s402, 4
        %s404 = scalar_lea.vmem %s6, %s403
        %p405 = pneg %p232
        %p406 = pneg %p229
        %p407 = pneg %p260
        %p408 = pneg %p257
        %s409 = sand.u32 %s247, 1
        %s410 = scalar_lea.sflag [#allocation4], %s409
        %s411 = sand.u32 %s247, 1
        %s412 = smul.addr %s411, 8
        %s413 = scalar_lea.vmem [#allocation3], %s412
        %p414 = scmp.lt.s32.totalorder %s27, 1
        %s415 = scalar_select %p414, %s27, 1
        %p416 = scmp.lt.s32.totalorder %s28, 0
        %s417 = scalar_select %p416, %s28, 0
        %s418 = sadd.s32 %s417, %s415
        %s419 = smul.addr %s418, 4
        %s420 = scalar_lea.vmem %s0, %s419
        %p421 = scmp.lt.s32.totalorder %s27, 1
        %s422 = scalar_select %p421, %s27, 1
        %p423 = scmp.lt.s32.totalorder %s30, 0
        %s424 = scalar_select %p423, %s30, 0
        %s425 = sadd.s32 %s424, %s422
        %s426 = smul.addr %s425, 4
        %s427 = scalar_lea.vmem %s1, %s426
        %p428 = scmp.lt.s32.totalorder %s27, 1
        %s429 = scalar_select %p428, %s27, 1
        %p430 = scmp.lt.s32.totalorder %s28, 0
        %s431 = scalar_select %p430, %s28, 0
        %p432 = scmp.lt.s32.totalorder %s30, 0
        %s433 = scalar_select %p432, %s30, 0
        %s434 = sadd.s32 %s433, %s431
        %s435 = sadd.s32 %s434, %s429
        %s436 = smul.addr %s435, 8
        %s437 = scalar_lea.vmem %s2, %s436
        %p438 = scmp.lt.s32.totalorder %s29, 3
        %s439 = scalar_select %p438, %s29, 3
        %s440 = smul.addr %s439, 4
        %s441 = smul.addr %s440, 4
        %s442 = scalar_lea.vmem %s3, %s441
        %p443 = scmp.lt.s32.totalorder %s29, 3
        %s444 = scalar_select %p443, %s29, 3
        %s445 = smul.addr %s444, 4
        %s446 = smul.addr %s445, 4
        %s447 = scalar_lea.vmem %s4, %s446
        %p448 = scmp.lt.s32.totalorder %s29, 3
        %s449 = scalar_select %p448, %s29, 3
        %s450 = smul.addr %s449, 4
        %s451 = smul.addr %s450, 4
        %s452 = scalar_lea.vmem %s5, %s451
        %p453 = scmp.lt.s32.totalorder %s29, 3
        %s454 = scalar_select %p453, %s29, 3
        %s455 = smul.addr %s454, 4
        %s456 = scalar_lea.vmem %s6, %s455
        %p458 = scmp.eq.s32.totalorder %s29, 0
        // Predicated region
        $region49: #{tpu_custom_call.1} parent=47 // pred_check
          %p459 = pneg %p458
        $region50: #{tpu_custom_call.1} parent=47 // pred_check_branch
          %461 = sbr.rel (%p459) target = $region52
        $region51: #{tpu_custom_call.1} parent=47 // pred_region
          %vm462 = vcmask 261120
          %463 = vst.msk [vmem:[#allocation2] sm:$0xff] %vm462, 0.0
        $region52: #{tpu_custom_call.1} parent=47 // pred_fallthru
          _
        %v464 = vld [vmem:[%s420] sm:$0xf]
        %v465 = vld [vmem:[%s442] sm:$0xf]
        %v466 = vld [vmem:[%s442 + $0x4] sm:$0xf]
        %v467 = vld [vmem:[%s442 + $0x8] sm:$0xf]
        %v468 = vld [vmem:[%s442 + $0xc] sm:$0xf]
        %v473 = vunpack.c.l.b16 %v465
        %v474 = vunpack.c.l.b16 %v466
        %v475 = vunpack.c.l.b16 %v467
        %v476 = vunpack.c.l.b16 %v468
        %v477 = vpack.c.b16 %v474, %v473
        %v478 = vpack.c.b16 %v476, %v475
        %vm481 = vcmask 261120
        %v483 = vsel %vm481, %v464, 0
        %485 = vmatprep.subr.bf16.mxu0 0
        %486 = vmatpush1.bf16.msra.mxu0 %v477
        %487 = vmatprep.subr.bf16.mxu0 0
        %488 = vmatpush1.bf16.msra.mxu0 %v478
        %489 = vmatprep.subr.bf16.mxu0 0
        %490 = vmatpush1.bf16.msra.mxu0 0
        %491 = vmatprep.subr.bf16.mxu0 0
        %492 = vmatpush1.bf16.msra.mxu0 0
        %493 = vmatprep.subr.bf16.mxu0 0
        %494 = vmatpush1.bf16.msra.mxu0 0
        %495 = vmatprep.subr.bf16.mxu0 0
        %496 = vmatpush1.bf16.msra.mxu0 0
        %497 = vmatprep.subr.bf16.mxu0 0
        %498 = vmatpush1.bf16.msra.mxu0 0
        %499 = vmatprep.subr.bf16.mxu0 0
        %500 = vmatpush1.bf16.msra.mxu0 0
        %501 = vmatprep.subr.bf16.mxu0 0
        %502 = vmatpush1.bf16.msra.mxu0 0
        %503 = vmatprep.subr.bf16.mxu0 0
        %504 = vmatpush1.bf16.msra.mxu0 0
        %505 = vmatprep.subr.bf16.mxu0 0
        %506 = vmatpush1.bf16.msra.mxu0 0
        %507 = vmatprep.subr.bf16.mxu0 0
        %508 = vmatpush1.bf16.msra.mxu0 0
        %509 = vmatprep.subr.bf16.mxu0 0
        %510 = vmatpush1.bf16.msra.mxu0 0
        %511 = vmatprep.subr.bf16.mxu0 0
        %512 = vmatpush1.bf16.msra.mxu0 0
        %513 = vmatprep.subr.bf16.mxu0 0
        %514 = vmatpush1.bf16.msra.mxu0 0
        %515 = vmatprep.subr.bf16.mxu0 0
        %516 = vmatpush1.bf16.msra.mxu0 0
        %517 = vmatprep.mubr.bf16.mxu0 0
        %518 = vmatmul.mubr.bf16.gmra.mrb[0].mxu0 %v483
        %v519 = vpop.f32.mrb[0].mxu0
        %v520 = vadd.f32 0.0, %v519
        %v521 = vpop.f32.mrb[0].mxu0
        %v522 = vpop.f32.mrb[0].mxu0
        %v523 = vpop.f32.mrb[0].mxu0
        %524 = vdwg.mxu0
        %v525 = vpack.c.bf16 %v520, %v520
        %v526 = vld [vmem:[%s427] sm:$0xf]
        %v527 = vld [vmem:[%s447] sm:$0xf]
        %v528 = vld [vmem:[%s447 + $0x4] sm:$0xf]
        %v529 = vld [vmem:[%s447 + $0x8] sm:$0xf]
        %v530 = vld [vmem:[%s447 + $0xc] sm:$0xf]
        %v535 = vunpack.c.l.b16 %v527
        %v536 = vunpack.c.l.b16 %v528
        %v537 = vunpack.c.l.b16 %v529
        %v538 = vunpack.c.l.b16 %v530
        %v539 = vpack.c.b16 %v536, %v535
        %v540 = vpack.c.b16 %v538, %v537
        %v544 = vsel %vm481, %v526, 0
        %546 = vmatprep.subr.bf16.mxu0 0
        %547 = vmatpush1.bf16.msra.mxu0 %v539
        %548 = vmatprep.subr.bf16.mxu0 0
        %549 = vmatpush1.bf16.msra.mxu0 %v540
        %550 = vmatprep.subr.bf16.mxu0 0
        %551 = vmatpush1.bf16.msra.mxu0 0
        %552 = vmatprep.subr.bf16.mxu0 0
        %553 = vmatpush1.bf16.msra.mxu0 0
        %554 = vmatprep.subr.bf16.mxu0 0
        %555 = vmatpush1.bf16.msra.mxu0 0
        %556 = vmatprep.subr.bf16.mxu0 0
        %557 = vmatpush1.bf16.msra.mxu0 0
        %558 = vmatprep.subr.bf16.mxu0 0
        %559 = vmatpush1.bf16.msra.mxu0 0
        %560 = vmatprep.subr.bf16.mxu0 0
        %561 = vmatpush1.bf16.msra.mxu0 0
        %562 = vmatprep.subr.bf16.mxu0 0
        %563 = vmatpush1.bf16.msra.mxu0 0
        %564 = vmatprep.subr.bf16.mxu0 0
        %565 = vmatpush1.bf16.msra.mxu0 0
        %566 = vmatprep.subr.bf16.mxu0 0
        %567 = vmatpush1.bf16.msra.mxu0 0
        %568 = vmatprep.subr.bf16.mxu0 0
        %569 = vmatpush1.bf16.msra.mxu0 0
        %570 = vmatprep.subr.bf16.mxu0 0
        %571 = vmatpush1.bf16.msra.mxu0 0
        %572 = vmatprep.subr.bf16.mxu0 0
        %573 = vmatpush1.bf16.msra.mxu0 0
        %574 = vmatprep.subr.bf16.mxu0 0
        %575 = vmatpush1.bf16.msra.mxu0 0
        %576 = vmatprep.subr.bf16.mxu0 0
        %577 = vmatpush1.bf16.msra.mxu0 0
        %578 = vmatprep.mubr.bf16.mxu0 0
        %579 = vmatmul.mubr.bf16.gmra.mrb[0].mxu0 %v544
        %v580 = vpop.f32.mrb[0].mxu0
        %v581 = vadd.f32 0.0, %v580
        %v582 = vpop.f32.mrb[0].mxu0
        %v583 = vpop.f32.mrb[0].mxu0
        %v584 = vpop.f32.mrb[0].mxu0
        %585 = vdwg.mxu0
        %v586 = vpack.c.bf16 %v581, %v581
        %v587 = vld [vmem:[%s452] sm:$0xf]
        %v588 = vld [vmem:[%s452 + $0x4] sm:$0xf]
        %v589 = vld [vmem:[%s452 + $0x8] sm:$0xf]
        %v590 = vld [vmem:[%s452 + $0xc] sm:$0xf]
        %v595 = vunpack.c.l.b16 %v587
        %v596 = vunpack.c.l.b16 %v588
        %v597 = vunpack.c.l.b16 %v589
        %v598 = vunpack.c.l.b16 %v590
        %v599 = vpack.c.b16 %v596, %v595
        %v600 = vpack.c.b16 %v598, %v597
        %603 = vmatprep.subr.bf16.mxu0 0
        %604 = vmatpush1.bf16.msra.mxu0 %v599
        %605 = vmatprep.subr.bf16.mxu0 0
        %606 = vmatpush1.bf16.msra.mxu0 %v600
        %607 = vmatprep.subr.bf16.mxu0 0
        %608 = vmatpush1.bf16.msra.mxu0 0
        %609 = vmatprep.subr.bf16.mxu0 0
        %610 = vmatpush1.bf16.msra.mxu0 0
        %611 = vmatprep.subr.bf16.mxu0 0
        %612 = vmatpush1.bf16.msra.mxu0 0
        %613 = vmatprep.subr.bf16.mxu0 0
        %614 = vmatpush1.bf16.msra.mxu0 0
        %615 = vmatprep.subr.bf16.mxu0 0
        %616 = vmatpush1.bf16.msra.mxu0 0
        %617 = vmatprep.subr.bf16.mxu0 0
        %618 = vmatpush1.bf16.msra.mxu0 0
        %619 = vmatprep.subr.bf16.mxu0 0
        %620 = vmatpush1.bf16.msra.mxu0 0
        %621 = vmatprep.subr.bf16.mxu0 0
        %622 = vmatpush1.bf16.msra.mxu0 0
        %623 = vmatprep.subr.bf16.mxu0 0
        %624 = vmatpush1.bf16.msra.mxu0 0
        %625 = vmatprep.subr.bf16.mxu0 0
        %626 = vmatpush1.bf16.msra.mxu0 0
        %627 = vmatprep.subr.bf16.mxu0 0
        %628 = vmatpush1.bf16.msra.mxu0 0
        %629 = vmatprep.subr.bf16.mxu0 0
        %630 = vmatpush1.bf16.msra.mxu0 0
        %631 = vmatprep.subr.bf16.mxu0 0
        %632 = vmatpush1.bf16.msra.mxu0 0
        %633 = vmatprep.subr.bf16.mxu0 0
        %634 = vmatpush1.bf16.msra.mxu0 0
        %635 = vmatprep.mubr.bf16.mxu0 0
        %636 = vmatmul.mubr.bf16.gmra.mrb[0].mxu0 %v544
        %v637 = vpop.f32.mrb[0].mxu0
        %v638 = vadd.f32 0.0, %v637
        %v639 = vpop.f32.mrb[0].mxu0
        %v640 = vpop.f32.mrb[0].mxu0
        %v641 = vpop.f32.mrb[0].mxu0
        %642 = vdwg.mxu0
        %v643 = vpack.c.bf16 %v638, %v638
        %v644 = vld [vmem:[%s437] sm:$0xff]
        %vm645 = vcmask 64512
        %v647 = vsel %vm645, %v525, 0
        %v650 = vsel %vm645, %v586, 0
        %652 = vmatprep.subr.bf16.mxu0 0
        %653 = vmatpush1.bf16.xpose.msra.mxu0 %v650
        %654 = vmatprep.subr.bf16.mxu0 0
        %655 = vmatpush1.bf16.xpose.msra.mxu0 0
        %656 = vmatprep.subr.bf16.mxu0 0
        %657 = vmatpush1.bf16.xpose.msra.mxu0 0
        %658 = vmatprep.subr.bf16.mxu0 0
        %659 = vmatpush1.bf16.xpose.msra.mxu0 0
        %660 = vmatprep.subr.bf16.mxu0 0
        %661 = vmatpush1.bf16.xpose.msra.mxu0 0
        %662 = vmatprep.subr.bf16.mxu0 0
        %663 = vmatpush1.bf16.xpose.msra.mxu0 0
        %664 = vmatprep.subr.bf16.mxu0 0
        %665 = vmatpush1.bf16.xpose.msra.mxu0 0
        %666 = vmatprep.subr.bf16.mxu0 0
        %667 = vmatpush1.bf16.xpose.msra.mxu0 0
        %668 = vmatprep.subr.bf16.mxu0 0
        %669 = vmatpush1.bf16.xpose.msra.mxu0 0
        %670 = vmatprep.subr.bf16.mxu0 0
        %671 = vmatpush1.bf16.xpose.msra.mxu0 0
        %672 = vmatprep.subr.bf16.mxu0 0
        %673 = vmatpush1.bf16.xpose.msra.mxu0 0
        %674 = vmatprep.subr.bf16.mxu0 0
        %675 = vmatpush1.bf16.xpose.msra.mxu0 0
        %676 = vmatprep.subr.bf16.mxu0 0
        %677 = vmatpush1.bf16.xpose.msra.mxu0 0
        %678 = vmatprep.subr.bf16.mxu0 0
        %679 = vmatpush1.bf16.xpose.msra.mxu0 0
        %680 = vmatprep.subr.bf16.mxu0 0
        %681 = vmatpush1.bf16.xpose.msra.mxu0 0
        %682 = vmatprep.subr.bf16.mxu0 0
        %683 = vmatpush1.bf16.xpose.msra.mxu0 0
        %684 = vmatprep.mubr.bf16.mxu0 0
        %685 = vmatmul.mubr.bf16.gmra.mrb[0].mxu0 %v647
        %v686 = vpop.f32.mrb[0].mxu0
        %v687 = vadd.f32 %v644, %v686
        %v688 = vpop.f32.mrb[0].mxu0
        %v689 = vpop.f32.mrb[0].mxu0
        %v690 = vpop.f32.mrb[0].mxu0
        %691 = vdwg.mxu0
        %v692 = vsel %vm645, %v687, -inf
        %693 = vmax.xlane.f32.xlu0 %v692
        %v694 = vpop.xlane.xlu0 %693
        %v695 = vsub.f32 %v687, %v694
        %v696 = vmul.f32 %v695, 1.442695
        %v697 = vpow.pop %v696
        %v698 = vsel %vm645, %v697, 0.0
        %699 = vadd.xlane.f32.xlu0 %v698
        %v700 = vpop.xlane.xlu0 %699
        %v701 = vpack.c.bf16 %v697, %v697
        %v703 = vsel %vm645, %v701, 0
        %vm705 = vcmask 1043456
        %v707 = vsel %vm705, %v643, 0
        %709 = vmatprep.subr.bf16.mxu0 0
        %710 = vmatpush1.bf16.msra.mxu0 %v707
        %711 = vmatprep.subr.bf16.mxu0 0
        %712 = vmatpush1.bf16.msra.mxu0 0
        %713 = vmatprep.subr.bf16.mxu0 0
        %714 = vmatpush1.bf16.msra.mxu0 0
        %715 = vmatprep.subr.bf16.mxu0 0
        %716 = vmatpush1.bf16.msra.mxu0 0
        %717 = vmatprep.subr.bf16.mxu0 0
        %718 = vmatpush1.bf16.msra.mxu0 0
        %719 = vmatprep.subr.bf16.mxu0 0
        %720 = vmatpush1.bf16.msra.mxu0 0
        %721 = vmatprep.subr.bf16.mxu0 0
        %722 = vmatpush1.bf16.msra.mxu0 0
        %723 = vmatprep.subr.bf16.mxu0 0
        %724 = vmatpush1.bf16.msra.mxu0 0
        %725 = vmatprep.subr.bf16.mxu0 0
        %726 = vmatpush1.bf16.msra.mxu0 0
        %727 = vmatprep.subr.bf16.mxu0 0
        %728 = vmatpush1.bf16.msra.mxu0 0
        %729 = vmatprep.subr.bf16.mxu0 0
        %730 = vmatpush1.bf16.msra.mxu0 0
        %731 = vmatprep.subr.bf16.mxu0 0
        %732 = vmatpush1.bf16.msra.mxu0 0
        %733 = vmatprep.subr.bf16.mxu0 0
        %734 = vmatpush1.bf16.msra.mxu0 0
        %735 = vmatprep.subr.bf16.mxu0 0
        %736 = vmatpush1.bf16.msra.mxu0 0
        %737 = vmatprep.subr.bf16.mxu0 0
        %738 = vmatpush1.bf16.msra.mxu0 0
        %739 = vmatprep.subr.bf16.mxu0 0
        %740 = vmatpush1.bf16.msra.mxu0 0
        %741 = vmatprep.mubr.bf16.mxu0 0
        %742 = vmatmul.mubr.bf16.gmra.mrb[0].mxu0 %v703
        %v743 = vpop.f32.mrb[0].mxu0
        %v744 = vadd.f32 0.0, %v743
        %v745 = vpop.f32.mrb[0].mxu0
        %v746 = vpop.f32.mrb[0].mxu0
        %v747 = vpop.f32.mrb[0].mxu0
        %748 = vdwg.mxu0
        %v749 = vrcp.pop %v700
        %v750 = vmul.f32 %v744, %v749
        %v751 = vpack.c.bf16 %v750, %v750
        %v752 = vld [vmem:[#allocation2] sm:$0xff]
        %v753 = vld [vmem:[%s456] sm:$0xf]
        %v755 = vsel %vm645, %v751, 0
        %v758 = vsel %vm705, %v753, 0
        %760 = vmatprep.subr.bf16.mxu0 0
        %761 = vmatpush1.bf16.msra.mxu0 %v758
        %762 = vmatprep.subr.bf16.mxu0 0
        %763 = vmatpush1.bf16.msra.mxu0 0
        %764 = vmatprep.subr.bf16.mxu0 0
        %765 = vmatpush1.bf16.msra.mxu0 0
        %766 = vmatprep.subr.bf16.mxu0 0
        %767 = vmatpush1.bf16.msra.mxu0 0
        %768 = vmatprep.subr.bf16.mxu0 0
        %769 = vmatpush1.bf16.msra.mxu0 0
        %770 = vmatprep.subr.bf16.mxu0 0
        %771 = vmatpush1.bf16.msra.mxu0 0
        %772 = vmatprep.subr.bf16.mxu0 0
        %773 = vmatpush1.bf16.msra.mxu0 0
        %774 = vmatprep.subr.bf16.mxu0 0
        %775 = vmatpush1.bf16.msra.mxu0 0
        %776 = vmatprep.subr.bf16.mxu0 0
        %777 = vmatpush1.bf16.msra.mxu0 0
        %778 = vmatprep.subr.bf16.mxu0 0
        %779 = vmatpush1.bf16.msra.mxu0 0
        %780 = vmatprep.subr.bf16.mxu0 0
        %781 = vmatpush1.bf16.msra.mxu0 0
        %782 = vmatprep.subr.bf16.mxu0 0
        %783 = vmatpush1.bf16.msra.mxu0 0
        %784 = vmatprep.subr.bf16.mxu0 0
        %785 = vmatpush1.bf16.msra.mxu0 0
        %786 = vmatprep.subr.bf16.mxu0 0
        %787 = vmatpush1.bf16.msra.mxu0 0
        %788 = vmatprep.subr.bf16.mxu0 0
        %789 = vmatpush1.bf16.msra.mxu0 0
        %790 = vmatprep.subr.bf16.mxu0 0
        %791 = vmatpush1.bf16.msra.mxu0 0
        %792 = vmatprep.mubr.bf16.mxu0 0
        %793 = vmatmul.mubr.bf16.gmra.mrb[0].mxu0 %v755
        %v794 = vpop.f32.mrb[0].mxu0
        %v795 = vadd.f32 0.0, %v794
        %v796 = vpop.f32.mrb[0].mxu0
        %v797 = vpop.f32.mrb[0].mxu0
        %v798 = vpop.f32.mrb[0].mxu0
        %799 = vdwg.mxu0
        %v800 = vadd.f32 %v752, %v795
        %801 = vst.msk [vmem:[#allocation2] sm:$0xff] %vm481, %v800
        %p802 = scmp.eq.s32.totalorder %s29, 3
        // Predicated region
        $region53: #{tpu_custom_call.1} parent=47 // pred_check
          %p803 = pneg %p802
        $region54: #{tpu_custom_call.1} parent=47 // pred_check_branch
          %805 = sbr.rel (%p803) target = $region56
        $region55: #{tpu_custom_call.1} parent=47 // pred_region
          %v806 = vld [vmem:[#allocation2] sm:$0xff]
          %807 = vst.msk [vmem:[%s413] sm:$0xff] %vm481, %v806
        $region56: #{tpu_custom_call.1} parent=47 // pred_fallthru
          _
        %s808 = sand.u32 %s247, 1
        %s809 = scalar_lea.sflag [#allocation4], %s808
        %s810 = sand.u32 %s247, 1
        %s811 = smul.addr %s810, 8
        %s812 = scalar_lea.vmem [#allocation3], %s811
        // Predicated region
        $region57: #{tpu_custom_call.1} parent=47 // pred_check
          %p813 = pneg %p257
        $region58: #{tpu_custom_call.1} parent=47 // pred_check_branch
          %815 = sbr.rel (%p813) target = $region60
        $region59: #{tpu_custom_call.1} parent=47 // pred_region
          %s817 = ssub.s32 128, 128
          %818 = vsyncadd %s809, %s817
          %s819 = sadd.s32 %s28, %s27
          %s820 = smul.addr %s819, 128
          %s821 = scalar_lea.hbm %s7, %s820
          %s823 = sshll.u32 %s812, 4
          %s824 = int_to_ptr.vmem [resolvable:$true] %s823
          %826 = dma.vmem_to_hbm [thread:$0]  %s824, 128, %s821, %s809
        $region60: #{tpu_custom_call.1} parent=47 // pred_fallthru
          _
      $region48: #{tpu_custom_call.1} parent=5 // pred_fallthru
        _
      %p827 = scmp.le.s32.totalorder 2, %s16
      // Predicated region
      $region61: #{tpu_custom_call.1} parent=5 // pred_check
        %p828 = pneg %p827
      $region62: #{tpu_custom_call.1} parent=5 // pred_check_branch
        %830 = sbr.rel (%p828) target = $region64
      $region63: #{tpu_custom_call.1} parent=5 // pred_region
        %s831 = ssub.s32 %s16, 2
        // Predicated region
        $region65: #{tpu_custom_call.1} parent=63 // pred_check
          %p832 = pneg %p263
        $region66: #{tpu_custom_call.1} parent=63 // pred_check_branch
          %834 = sbr.rel (%p832) target = $region68
        $region67: #{tpu_custom_call.1} parent=63 // pred_region
          %s835 = sand.u32 %s248, 1
          %s836 = scalar_lea.sflag [#allocation4], %s835
          %s837 = sand.u32 %s248, 1
          %s838 = smul.addr %s837, 8
          %s839 = scalar_lea.vmem [#allocation3], %s838
          %840 = dma.done %s836, 128
        $region68: #{tpu_custom_call.1} parent=63 // pred_fallthru
          _
      $region64: #{tpu_custom_call.1} parent=5 // pred_fallthru
        _
    $region6: #{tpu_custom_call.1} parent=1 // loop_footer
      %s20 = sadd.s32 1, %s16
    $region7: #{tpu_custom_call.1} parent=1 // loop_footer_branch
      %15 = sbr.rel target = $region3
    $region8: #{tpu_custom_call.1} parent=1 // loop_exit
      _
    %841 = vsyncpa [#allocation4], 1
    %s842 = scalar_lea.sflag [#allocation4], 1
    %843 = vsyncpa %s842, 1

</llo_original>
